<compile_context>
chip_gen: v5e
topology: v5e:2x2
jax: 0.10.0
libtpu: 0.0.40
codegen_flags: <defaults>
</compile_context>

<pallas_src>
import math

import jax
import jax.numpy as jnp
from jax import lax
from jax.experimental import pallas as pl
from jax.experimental.pallas import tpu as pltpu

UIN_DIM = 20
IIN_DIM = 12
OUT_DIM = 1
USE_SIMILARITY = True

_TB_MAX = 8192          # max batch-tile width (lanes)


def _round_up(n, m):
    return ((n + m - 1) // m) * m


def _choose_tile(B):
    """Pick (TB, B_pad) so padding waste is bounded and, for large B, the grid
    has an even number of >= 2 steps (feeds both v7x TensorCores)."""
    n = max(1, pl.cdiv(B, _TB_MAX))
    if B >= 256:
        n = max(n, 2)
        if n % 2:
            n += 1
    TB = _round_up(pl.cdiv(B, n), 128)
    B_pad = _round_up(B, TB)
    return TB, B_pad


# --------------------------------------------------------------------------
# Kernel
# --------------------------------------------------------------------------
def _make_kernel(use_similarity):
    f32 = jnp.float32

    if use_similarity:
        def kernel(x_ref, w1_ref, b1_ref, wg_ref, bi2_ref, wf1i_ref,
                   wf1s_ref, bf1_ref, wf2_ref, bf2_ref, o_ref):
            # Feature-major tile: (D, TB), batch on lanes.  Cast streamed bf16
            # to f32 once (cheap VPU convert; keeps all math f32, incl. v5e).
            x = x_ref[...].astype(f32)

            # Towers: block-diag(ufc1, ifc1) in a single MXU pass, K on sublanes.
            t = jnp.dot(w1_ref[...], x, preferred_element_type=f32)      # (12, TB)
            z1 = jnp.maximum(t + b1_ref[...], 0.0)                       # [u1; i1]

            # ifc2 (on i1) and fc1 u1-part folded into one zero-padded weight.
            g = jnp.dot(wg_ref[...], z1, preferred_element_type=f32)     # (16, TB)
            i2 = jnp.maximum(g[0:4] + bi2_ref[...], 0.0)                 # (4, TB)
            h_u = g[8:12]                                                # (4, TB)
            h_i = jnp.dot(wf1i_ref[...], i2, preferred_element_type=f32)

            # Cosine similarity: direct sublane slices of the resident x tile
            # (no selection rows in the first matmul), 10-row reductions on the
            # XLU (off the MXU push/pop stream), rsqrt instead of sqrt+divide.
            u = x[2:12]                                                  # x[:, 2:12]^T
            a = x[22:32]                                                 # x[:, 22:32]^T
            duv = jnp.sum(u * a, axis=0, keepdims=True)                  # (1, TB)
            nu2 = jnp.sum(u * u, axis=0, keepdims=True)
            na2 = jnp.sum(a * a, axis=0, keepdims=True)
            eps2 = f32(1e-8) * f32(1e-8)
            # max(sqrt(v), eps) == sqrt(max(v, eps^2)) for v >= 0.
            inv_den = (lax.rsqrt(jnp.maximum(nu2, eps2)) *
                       lax.rsqrt(jnp.maximum(na2, eps2)))
            sim = duv * inv_den * f32(10.0)                              # (1, TB)

            # fc1 (split, no concat) + fc2 — lane-dense (out_dim, TB) store.
            h = jnp.maximum(h_u + h_i + wf1s_ref[...] * sim + bf1_ref[...], 0.0)
            o_ref[...] = (jnp.dot(wf2_ref[...], h, preferred_element_type=f32)
                          + bf2_ref[...])
        return kernel

    def kernel(x_ref, w1_ref, b1_ref, wg_ref, bi2_ref, wf1i_ref,
               bf1_ref, wf2_ref, bf2_ref, o_ref):
        x = x_ref[...].astype(f32)
        t = jnp.dot(w1_ref[...], x, preferred_element_type=f32)          # (12, TB)
        z1 = jnp.maximum(t + b1_ref[...], 0.0)
        g = jnp.dot(wg_ref[...], z1, preferred_element_type=f32)         # (16, TB)
        i2 = jnp.maximum(g[0:4] + bi2_ref[...], 0.0)
        h_u = g[8:12]
        h_i = jnp.dot(wf1i_ref[...], i2, preferred_element_type=f32)
        h = jnp.maximum(h_u + h_i + bf1_ref[...], 0.0)
        o_ref[...] = (jnp.dot(wf2_ref[...], h, preferred_element_type=f32)
                      + bf2_ref[...])
    return kernel


# --------------------------------------------------------------------------
# Parameters
# --------------------------------------------------------------------------
def init_raw_params(key, uin_dim=UIN_DIM, iin_dim=IIN_DIM, out_dim=OUT_DIM,
                    use_similarity=USE_SIMILARITY):
    """Raw parameters in PyTorch nn.Linear layout: W (out, in), b (out,).
    Weights: xavier_uniform_ (as in the torch module); biases: torch default."""
    def linear(k, fan_in, fan_out):
        kw, kb = jax.random.split(k)
        bw = math.sqrt(6.0 / (fan_in + fan_out))
        w = jax.random.uniform(kw, (fan_out, fan_in), jnp.float32,
                               minval=-bw, maxval=bw)
        bb = 1.0 / math.sqrt(fan_in)
        b = jax.random.uniform(kb, (fan_out,), jnp.float32,
                               minval=-bb, maxval=bb)
        return w, b

    k1, k2, k3, k4, k5 = jax.random.split(key, 5)
    wu, bu = linear(k1, uin_dim, 4)
    wi1, bi1 = linear(k2, iin_dim, 8)
    wi2, bi2 = linear(k3, 8, 4)
    wf1, bf1 = linear(k4, 9 if use_similarity else 8, 4)
    wf2, bf2 = linear(k5, 4, out_dim)
    return (wu, bu, wi1, bi1, wi2, bi2, wf1, bf1, wf2, bf2)


def fuse_params(raw, uin_dim=UIN_DIM, iin_dim=IIN_DIM, out_dim=OUT_DIM,
                use_similarity=USE_SIMILARITY):
    """Fold the 5 Linear layers into the fused, zero-padded, feature-major
    weights the kernel consumes."""
    wu, bu, wi1, bi1, wi2, bi2, wf1, bf1, wf2, bf2 = raw
    D = uin_dim + iin_dim
    f32 = jnp.float32

    # block-diag(ufc1, ifc1) — one (12, D) matmul for both towers.
    w1 = jnp.zeros((12, D), f32)
    w1 = w1.at[0:4, :uin_dim].set(wu)
    w1 = w1.at[4:12, uin_dim:].set(wi1)
    b1 = jnp.concatenate([bu, bi1]).reshape(12, 1)

    # ifc2 (consumes i1 = rows 4..11 of z1) and fc1 u1-part (rows 0..3),
    # stacked at 8-aligned sublane offsets.
    wg = jnp.zeros((16, 12), f32)
    wg = wg.at[0:4, 4:12].set(wi2)
    wg = wg.at[8:12, 0:4].set(wf1[:, :4])
    bi2c = bi2.reshape(4, 1)
    wf1i = wf1[:, 4:8]
    bf1c = bf1.reshape(4, 1)
    bf2c = bf2.reshape(out_dim, 1)

    if not use_similarity:
        return (w1, b1, wg, bi2c, wf1i, bf1c, wf2, bf2c)

    # The cosine-similarity slices x[:, 2:12] / x[:, 22:32] are hard-coded in
    # the PyTorch module; the kernel slices the same absolute feature rows.
    assert D >= 32, (
        "use_similarity=True requires uin_dim + iin_dim >= 32 "
        "(hard-coded x[:, 2:12] / x[:, 22:32] slices)")
    wf1s = wf1[:, 8:9]                                   # sim column of fc1
    return (w1, b1, wg, bi2c, wf1i, wf1s, bf1c, wf2, bf2c)


# --------------------------------------------------------------------------
# Wrapper
# --------------------------------------------------------------------------
def net_forward(x, fused_params, *, out_dim=OUT_DIM,
                use_similarity=USE_SIMILARITY, x_stream_dtype=jnp.bfloat16):
    B, D = x.shape
    TB, B_pad = _choose_tile(B)

    # Feature-major, (optionally) bf16, batch-padded streamed operand.
    # Under jit the cast + transpose + pad fuse into a single XLA pass; best
    # case, the producer of x emits this layout/dtype directly and this is a
    # no-op.  Padded batch columns are zeros (sim path clamps to eps -> 0).
    x_fm = jnp.pad(x.astype(x_stream_dtype).T, ((0, 0), (0, B_pad - B)))

    kernel = _make_kernel(use_similarity)
    in_specs = [pl.BlockSpec((D, TB), lambda i: (0, i))]      # streamed, lane-dense
    in_specs += [pl.BlockSpec(p.shape, lambda i: (0, 0))      # VMEM-resident W/b
                 for p in fused_params]

    out_t = pl.pallas_call(
        kernel,
        out_shape=jax.ShapeDtypeStruct((out_dim, B_pad), jnp.float32),
        grid=(B_pad // TB,),
        in_specs=in_specs,
        out_specs=pl.BlockSpec((out_dim, TB), lambda i: (0, i)),   # lane-dense store
        compiler_params=pltpu.CompilerParams(
            dimension_semantics=("parallel",),        # v7x: shard batch over 2 TCs
            vmem_limit_bytes=32 * 1024 * 1024),
    )(x_fm, *fused_params)
    return out_t[:, :B].T                             # (B, out_dim)


# --------------------------------------------------------------------------
# Pure-JAX reference (uses the raw, unfused PyTorch-layout weights)
# --------------------------------------------------------------------------
def net_forward_ref(x, raw, *, uin_dim=UIN_DIM, use_similarity=USE_SIMILARITY):
    wu, bu, wi1, bi1, wi2, bi2, wf1, bf1, wf2, bf2 = raw
    u1 = jax.nn.relu(x[:, :uin_dim] @ wu.T + bu)
    i1 = jax.nn.relu(x[:, uin_dim:] @ wi1.T + bi1)
    i2 = jax.nn.relu(i1 @ wi2.T + bi2)
    parts = [u1, i2]
    if use_similarity:
        up, ap = x[:, 2:12], x[:, 22:32]
        dot = jnp.sum(up * ap, axis=1, keepdims=True)
        nu = jnp.sqrt(jnp.sum(up * up, axis=1, keepdims=True))
        na = jnp.sqrt(jnp.sum(ap * ap, axis=1, keepdims=True))
        eps = 1e-8
        parts.append(dot / (jnp.maximum(nu, eps) * jnp.maximum(na, eps)) * 10.0)
    in_x = jnp.concatenate(parts, axis=1)
    h = jax.nn.relu(in_x @ wf1.T + bf1)
    return h @ wf2.T + bf2


if __name__ == "__main__":
    key = jax.random.PRNGKey(0)
    kx, kp = jax.random.split(key)

    B = 16
    x = jax.random.normal(kx, (B, UIN_DIM + IIN_DIM), jnp.float32)

    raw = init_raw_params(kp, UIN_DIM, IIN_DIM, OUT_DIM, USE_SIMILARITY)
    fused = fuse_params(raw, UIN_DIM, IIN_DIM, OUT_DIM, USE_SIMILARITY)

    out = jax.jit(net_forward)(x, fused)
    out = jax.block_until_ready(out)

    # The kernel intentionally streams x as bf16 (bandwidth trade); compare
    # against a reference that sees the same bf16-rounded input.
    x_r = x.astype(jnp.bfloat16).astype(jnp.float32)
    ref = net_forward_ref(x_r, raw, uin_dim=UIN_DIM, use_similarity=USE_SIMILARITY)

    assert out.shape == (B, OUT_DIM)
    assert jnp.allclose(out, ref, atol=1e-4, rtol=1e-4), "mismatch vs reference"

    print("KERNEL_OK")
</pallas_src>

<mosaic_0001>
module attributes {stable_mosaic.version = 11 : i64} {
  func.func @kernel(%arg0: i32, %arg1: memref<32x128xbf16, #tpu.memory_space<vmem>>, %arg2: memref<12x32xf32, #tpu.memory_space<vmem>>, %arg3: memref<12x1xf32, #tpu.memory_space<vmem>>, %arg4: memref<16x12xf32, #tpu.memory_space<vmem>>, %arg5: memref<4x1xf32, #tpu.memory_space<vmem>>, %arg6: memref<4x4xf32, #tpu.memory_space<vmem>>, %arg7: memref<4x1xf32, #tpu.memory_space<vmem>>, %arg8: memref<4x1xf32, #tpu.memory_space<vmem>>, %arg9: memref<1x4xf32, #tpu.memory_space<vmem>>, %arg10: memref<1x1xf32, #tpu.memory_space<vmem>>, %arg11: memref<1x128xf32, #tpu.memory_space<vmem>>) attributes {dimension_semantics = [#tpu.dimension_semantics<parallel>], iteration_bounds = array<i64: 1>, scalar_prefetch = 0 : i64, scratch_operands = 0 : i64, tpu.core_type = #tpu.core_type<tc>, window_params = [{transform_indices = @transform_0, window_bounds = array<i64: 32, 128>}, {pipeline_mode = #tpu.pipeline_mode<synchronous>, transform_indices = @transform_1, window_bounds = array<i64: 12, 32>}, {pipeline_mode = #tpu.pipeline_mode<synchronous>, transform_indices = @transform_2, window_bounds = array<i64: 12, 1>}, {pipeline_mode = #tpu.pipeline_mode<synchronous>, transform_indices = @transform_3, window_bounds = array<i64: 16, 12>}, {pipeline_mode = #tpu.pipeline_mode<synchronous>, transform_indices = @transform_4, window_bounds = array<i64: 4, 1>}, {pipeline_mode = #tpu.pipeline_mode<synchronous>, transform_indices = @transform_5, window_bounds = array<i64: 4, 4>}, {pipeline_mode = #tpu.pipeline_mode<synchronous>, transform_indices = @transform_6, window_bounds = array<i64: 4, 1>}, {pipeline_mode = #tpu.pipeline_mode<synchronous>, transform_indices = @transform_7, window_bounds = array<i64: 4, 1>}, {pipeline_mode = #tpu.pipeline_mode<synchronous>, transform_indices = @transform_8, window_bounds = array<i64: 1, 4>}, {pipeline_mode = #tpu.pipeline_mode<synchronous>, transform_indices = @transform_9, window_bounds = array<i64: 1, 1>}, {transform_indices = @transform_10, window_bounds = array<i64: 1, 128>}]} {
    %c0 = arith.constant 0 : index
    %c0_0 = arith.constant 0 : index
    %0 = vector.load %arg1[%c0, %c0_0] : memref<32x128xbf16, #tpu.memory_space<vmem>>, vector<32x128xbf16>
    %1 = arith.extf %0 : vector<32x128xbf16> to vector<32x128xf32>
    %c0_1 = arith.constant 0 : index
    %c0_2 = arith.constant 0 : index
    %2 = vector.load %arg2[%c0_1, %c0_2] : memref<12x32xf32, #tpu.memory_space<vmem>>, vector<12x32xf32>
    %cst = arith.constant dense<0.000000e+00> : vector<12x128xf32>
    %3 = tpu.matmul %2, %1, %cst {dimension_numbers = #tpu.dot_dimension_numbers<[1], [0], [0], [1], [0, 0, 1, 1], [], []>} : vector<12x32xf32>, vector<32x128xf32>, vector<12x128xf32> -> vector<12x128xf32>
    %c0_3 = arith.constant 0 : index
    %c0_4 = arith.constant 0 : index
    %4 = vector.load %arg3[%c0_3, %c0_4] : memref<12x1xf32, #tpu.memory_space<vmem>>, vector<12x1xf32>
    %5 = vector.broadcast %4 : vector<12x1xf32> to vector<12x128xf32>
    %6 = arith.addf %3, %5 : vector<12x128xf32>
    %cst_5 = arith.constant 0.000000e+00 : f32
    %7 = vector.broadcast %cst_5 : f32 to vector<12x128xf32>
    %8 = arith.maximumf %6, %7 : vector<12x128xf32>
    %c0_6 = arith.constant 0 : index
    %c0_7 = arith.constant 0 : index
    %9 = vector.load %arg4[%c0_6, %c0_7] : memref<16x12xf32, #tpu.memory_space<vmem>>, vector<16x12xf32>
    %cst_8 = arith.constant dense<0.000000e+00> : vector<16x128xf32>
    %10 = tpu.matmul %9, %8, %cst_8 {dimension_numbers = #tpu.dot_dimension_numbers<[1], [0], [0], [1], [0, 0, 1, 1], [], []>} : vector<16x12xf32>, vector<12x128xf32>, vector<16x128xf32> -> vector<16x128xf32>
    %11 = vector.extract_strided_slice %10 {offsets = [0, 0], sizes = [4, 128], strides = [1, 1]} : vector<16x128xf32> to vector<4x128xf32>
    %c0_9 = arith.constant 0 : index
    %c0_10 = arith.constant 0 : index
    %12 = vector.load %arg5[%c0_9, %c0_10] : memref<4x1xf32, #tpu.memory_space<vmem>>, vector<4x1xf32>
    %13 = vector.broadcast %12 : vector<4x1xf32> to vector<4x128xf32>
    %14 = arith.addf %11, %13 : vector<4x128xf32>
    %cst_11 = arith.constant 0.000000e+00 : f32
    %15 = vector.broadcast %cst_11 : f32 to vector<4x128xf32>
    %16 = arith.maximumf %14, %15 : vector<4x128xf32>
    %17 = vector.extract_strided_slice %10 {offsets = [8, 0], sizes = [4, 128], strides = [1, 1]} : vector<16x128xf32> to vector<4x128xf32>
    %c0_12 = arith.constant 0 : index
    %c0_13 = arith.constant 0 : index
    %18 = vector.load %arg6[%c0_12, %c0_13] : memref<4x4xf32, #tpu.memory_space<vmem>>, vector<4x4xf32>
    %cst_14 = arith.constant dense<0.000000e+00> : vector<4x128xf32>
    %19 = tpu.matmul %18, %16, %cst_14 {dimension_numbers = #tpu.dot_dimension_numbers<[1], [0], [0], [1], [0, 0, 1, 1], [], []>} : vector<4x4xf32>, vector<4x128xf32>, vector<4x128xf32> -> vector<4x128xf32>
    %20 = vector.extract_strided_slice %1 {offsets = [2, 0], sizes = [10, 128], strides = [1, 1]} : vector<32x128xf32> to vector<10x128xf32>
    %21 = vector.extract_strided_slice %1 {offsets = [22, 0], sizes = [10, 128], strides = [1, 1]} : vector<32x128xf32> to vector<10x128xf32>
    %22 = arith.mulf %20, %21 : vector<10x128xf32>
    %cst_15 = arith.constant dense<0.000000e+00> : vector<128xf32>
    %23 = vector.multi_reduction <add>, %22, %cst_15 [0] : vector<10x128xf32> to vector<128xf32>
    %24 = vector.shape_cast %23 : vector<128xf32> to vector<1x128xf32>
    %25 = arith.mulf %20, %20 : vector<10x128xf32>
    %cst_16 = arith.constant dense<0.000000e+00> : vector<128xf32>
    %26 = vector.multi_reduction <add>, %25, %cst_16 [0] : vector<10x128xf32> to vector<128xf32>
    %27 = vector.shape_cast %26 : vector<128xf32> to vector<1x128xf32>
    %28 = arith.mulf %21, %21 : vector<10x128xf32>
    %cst_17 = arith.constant dense<0.000000e+00> : vector<128xf32>
    %29 = vector.multi_reduction <add>, %28, %cst_17 [0] : vector<10x128xf32> to vector<128xf32>
    %30 = vector.shape_cast %29 : vector<128xf32> to vector<1x128xf32>
    %cst_18 = arith.constant 9.99999993E-9 : f32
    %cst_19 = arith.constant 9.99999993E-9 : f32
    %31 = arith.mulf %cst_18, %cst_19 : f32
    %32 = vector.broadcast %31 : f32 to vector<1x128xf32>
    %33 = arith.maximumf %27, %32 : vector<1x128xf32>
    %34 = math.rsqrt %33 : vector<1x128xf32>
    %35 = vector.broadcast %31 : f32 to vector<1x128xf32>
    %36 = arith.maximumf %30, %35 : vector<1x128xf32>
    %37 = math.rsqrt %36 : vector<1x128xf32>
    %38 = arith.mulf %34, %37 : vector<1x128xf32>
    %39 = arith.mulf %24, %38 : vector<1x128xf32>
    %cst_20 = arith.constant 1.000000e+01 : f32
    %40 = vector.broadcast %cst_20 : f32 to vector<1x128xf32>
    %41 = arith.mulf %39, %40 : vector<1x128xf32>
    %42 = arith.addf %17, %19 : vector<4x128xf32>
    %c0_21 = arith.constant 0 : index
    %c0_22 = arith.constant 0 : index
    %43 = vector.load %arg7[%c0_21, %c0_22] : memref<4x1xf32, #tpu.memory_space<vmem>>, vector<4x1xf32>
    %44 = vector.broadcast %43 : vector<4x1xf32> to vector<4x128xf32>
    %45 = vector.broadcast %41 : vector<1x128xf32> to vector<4x128xf32>
    %46 = arith.mulf %44, %45 : vector<4x128xf32>
    %47 = arith.addf %42, %46 : vector<4x128xf32>
    %c0_23 = arith.constant 0 : index
    %c0_24 = arith.constant 0 : index
    %48 = vector.load %arg8[%c0_23, %c0_24] : memref<4x1xf32, #tpu.memory_space<vmem>>, vector<4x1xf32>
    %49 = vector.broadcast %48 : vector<4x1xf32> to vector<4x128xf32>
    %50 = arith.addf %47, %49 : vector<4x128xf32>
    %cst_25 = arith.constant 0.000000e+00 : f32
    %51 = vector.broadcast %cst_25 : f32 to vector<4x128xf32>
    %52 = arith.maximumf %50, %51 : vector<4x128xf32>
    %c0_26 = arith.constant 0 : index
    %c0_27 = arith.constant 0 : index
    %53 = vector.load %arg9[%c0_26, %c0_27] : memref<1x4xf32, #tpu.memory_space<vmem>>, vector<1x4xf32>
    %cst_28 = arith.constant dense<0.000000e+00> : vector<1x128xf32>
    %54 = tpu.matmul %53, %52, %cst_28 {dimension_numbers = #tpu.dot_dimension_numbers<[1], [0], [0], [1], [0, 0, 1, 1], [], []>} : vector<1x4xf32>, vector<4x128xf32>, vector<1x128xf32> -> vector<1x128xf32>
    %c0_29 = arith.constant 0 : index
    %c0_30 = arith.constant 0 : index
    %55 = vector.load %arg10[%c0_29, %c0_30] : memref<1x1xf32, #tpu.memory_space<vmem>>, vector<1x1xf32>
    %56 = vector.broadcast %55 : vector<1x1xf32> to vector<1x128xf32>
    %57 = arith.addf %54, %56 : vector<1x128xf32>
    %c0_31 = arith.constant 0 : index
    %c0_32 = arith.constant 0 : index
    %58 = vector.load %arg11[%c0_31, %c0_32] : memref<1x128xf32, #tpu.memory_space<vmem>>, vector<1x128xf32>
    tpu.vector_store %arg11[%c0_31, %c0_32], %57 {strides = array<i32>} : memref<1x128xf32, #tpu.memory_space<vmem>>, vector<1x128xf32>,
    return
  }
  func.func @transform_0(%arg0: i32) -> (i32, i32) {
    %c0_i32 = arith.constant 0 : i32
    %c0_i32_0 = arith.constant 0 : i32
    return %c0_i32, %arg0 : i32, i32
  }
  func.func @transform_1(%arg0: i32) -> (i32, i32) {
    %c0_i32 = arith.constant 0 : i32
    %c0_i32_0 = arith.constant 0 : i32
    %c0_i32_1 = arith.constant 0 : i32
    return %c0_i32, %c0_i32_0 : i32, i32
  }
  func.func @transform_2(%arg0: i32) -> (i32, i32) {
    %c0_i32 = arith.constant 0 : i32
    %c0_i32_0 = arith.constant 0 : i32
    %c0_i32_1 = arith.constant 0 : i32
    return %c0_i32, %c0_i32_0 : i32, i32
  }
  func.func @transform_3(%arg0: i32) -> (i32, i32) {
    %c0_i32 = arith.constant 0 : i32
    %c0_i32_0 = arith.constant 0 : i32
    %c0_i32_1 = arith.constant 0 : i32
    return %c0_i32, %c0_i32_0 : i32, i32
  }
  func.func @transform_4(%arg0: i32) -> (i32, i32) {
    %c0_i32 = arith.constant 0 : i32
    %c0_i32_0 = arith.constant 0 : i32
    %c0_i32_1 = arith.constant 0 : i32
    return %c0_i32, %c0_i32_0 : i32, i32
  }
  func.func @transform_5(%arg0: i32) -> (i32, i32) {
    %c0_i32 = arith.constant 0 : i32
    %c0_i32_0 = arith.constant 0 : i32
    %c0_i32_1 = arith.constant 0 : i32
    return %c0_i32, %c0_i32_0 : i32, i32
  }
  func.func @transform_6(%arg0: i32) -> (i32, i32) {
    %c0_i32 = arith.constant 0 : i32
    %c0_i32_0 = arith.constant 0 : i32
    %c0_i32_1 = arith.constant 0 : i32
    return %c0_i32, %c0_i32_0 : i32, i32
  }
  func.func @transform_7(%arg0: i32) -> (i32, i32) {
    %c0_i32 = arith.constant 0 : i32
    %c0_i32_0 = arith.constant 0 : i32
    %c0_i32_1 = arith.constant 0 : i32
    return %c0_i32, %c0_i32_0 : i32, i32
  }
  func.func @transform_8(%arg0: i32) -> (i32, i32) {
    %c0_i32 = arith.constant 0 : i32
    %c0_i32_0 = arith.constant 0 : i32
    %c0_i32_1 = arith.constant 0 : i32
    return %c0_i32, %c0_i32_0 : i32, i32
  }
  func.func @transform_9(%arg0: i32) -> (i32, i32) {
    %c0_i32 = arith.constant 0 : i32
    %c0_i32_0 = arith.constant 0 : i32
    %c0_i32_1 = arith.constant 0 : i32
    return %c0_i32, %c0_i32_0 : i32, i32
  }
  func.func @transform_10(%arg0: i32) -> (i32, i32) {
    %c0_i32 = arith.constant 0 : i32
    %c0_i32_0 = arith.constant 0 : i32
    return %c0_i32, %arg0 : i32, i32
  }
}

</mosaic_0001>

<llo_original>
// kernel: net_forward.1
$region0: #{net_forward.1}
  #allocation0 [shape = 'u32[]', space=smem, size = 0x4, offset = 0x4, fixed_abs, tag = 'smem constant byte address 0x4 - core index']
  #allocation1 [shape = 'u32[72,128]{1,0:T(1,128)}', space=vmem, size = 0x9000, scoped, tag = 'internal scratch']
  #allocation2 [shape = 'f32[1,1]{1,0:T(1,128)S(1)}', space=vmem, size = 0x200, scoped, tag = 'scoped memory for net_forward.1']
  %s0 = inlined_call_operand.vmem [shape: bf16[32,128], index: 0, kind: input, shape index: {}]
  %s1 = inlined_call_operand.vmem [shape: f32[12,32], index: 1, kind: input, shape index: {}]
  %s2 = inlined_call_operand.vmem [shape: f32[12,1], index: 2, kind: input, shape index: {}]
  %s3 = inlined_call_operand.vmem [shape: f32[16,12], index: 3, kind: input, shape index: {}]
  %s4 = inlined_call_operand.vmem [shape: f32[4,1], index: 4, kind: input, shape index: {}]
  %s5 = inlined_call_operand.vmem [shape: f32[4,4], index: 5, kind: input, shape index: {}]
  %s6 = inlined_call_operand.vmem [shape: f32[4,1], index: 6, kind: input, shape index: {}]
  %s7 = inlined_call_operand.vmem [shape: f32[4,1], index: 7, kind: input, shape index: {}]
  %s8 = inlined_call_operand.vmem [shape: f32[1,4], index: 8, kind: input, shape index: {}]
  %s9 = inlined_call_operand.<no memory space> [shape: f32[1,1], index: 9, kind: input, shape index: {}]
  %s10 = inlined_call_operand.vmem [shape: f32[1,128], index: 10, kind: output, shape index: {}]
  %s11 = sld [smem:[#allocation0]]
  $region50: #{net_forward.1} parent=0
    _
  %s13 = ssub.s32 1, %s11
  %s14 = scalar_select 0, %s13, %s11
  %v15 = vstv %s9
  %16 = vst [vmem:[#allocation2] sm:$0x1] %v15
  // Predicated region
  $region2: #{net_forward.1} parent=0 // pred_check
    _
  $region3: #{net_forward.1} parent=0 // pred_check_branch
    %18 = sbr.rel (0) target = $region5
  $region4: #{net_forward.1} parent=0 // pred_region
    _
  $region5: #{net_forward.1} parent=0 // pred_fallthru
    _
  // Predicated region
  $region6: #{net_forward.1} parent=0 // pred_check
    _
  $region7: #{net_forward.1} parent=0 // pred_check_branch
    %20 = sbr.rel (0) target = $region9
  $region8: #{net_forward.1} parent=0 // pred_region
    _
  $region9: #{net_forward.1} parent=0 // pred_fallthru
    _
  // Predicated region
  $region10: #{net_forward.1} parent=0 // pred_check
    _
  $region11: #{net_forward.1} parent=0 // pred_check_branch
    %22 = sbr.rel (0) target = $region13
  $region12: #{net_forward.1} parent=0 // pred_region
    _
  $region13: #{net_forward.1} parent=0 // pred_fallthru
    _
  // Predicated region
  $region14: #{net_forward.1} parent=0 // pred_check
    _
  $region15: #{net_forward.1} parent=0 // pred_check_branch
    %24 = sbr.rel (0) target = $region17
  $region16: #{net_forward.1} parent=0 // pred_region
    _
  $region17: #{net_forward.1} parent=0 // pred_fallthru
    _
  // Predicated region
  $region18: #{net_forward.1} parent=0 // pred_check
    _
  $region19: #{net_forward.1} parent=0 // pred_check_branch
    %26 = sbr.rel (0) target = $region21
  $region20: #{net_forward.1} parent=0 // pred_region
    _
  $region21: #{net_forward.1} parent=0 // pred_fallthru
    _
  // Predicated region
  $region22: #{net_forward.1} parent=0 // pred_check
    _
  $region23: #{net_forward.1} parent=0 // pred_check_branch
    %28 = sbr.rel (0) target = $region25
  $region24: #{net_forward.1} parent=0 // pred_region
    _
  $region25: #{net_forward.1} parent=0 // pred_fallthru
    _
  // Predicated region
  $region26: #{net_forward.1} parent=0 // pred_check
    _
  $region27: #{net_forward.1} parent=0 // pred_check_branch
    %30 = sbr.rel (0) target = $region29
  $region28: #{net_forward.1} parent=0 // pred_region
    _
  $region29: #{net_forward.1} parent=0 // pred_fallthru
    _
  // Predicated region
  $region30: #{net_forward.1} parent=0 // pred_check
    _
  $region31: #{net_forward.1} parent=0 // pred_check_branch
    %32 = sbr.rel (0) target = $region33
  $region32: #{net_forward.1} parent=0 // pred_region
    _
  $region33: #{net_forward.1} parent=0 // pred_fallthru
    _
  // Predicated region
  $region34: #{net_forward.1} parent=0 // pred_check
    _
  $region35: #{net_forward.1} parent=0 // pred_check_branch
    %34 = sbr.rel (0) target = $region37
  $region36: #{net_forward.1} parent=0 // pred_region
    _
  $region37: #{net_forward.1} parent=0 // pred_fallthru
    _
  // Predicated region
  $region38: #{net_forward.1} parent=0 // pred_check
    _
  $region39: #{net_forward.1} parent=0 // pred_check_branch
    %36 = sbr.rel (0) target = $region41
  $region40: #{net_forward.1} parent=0 // pred_region
    _
  $region41: #{net_forward.1} parent=0 // pred_fallthru
    _
  %v37 = vld [vmem:[%s0] sm:$0xf]
  %v38 = vld [vmem:[%s0 + $0x4] sm:$0xf]
  %v39 = vld [vmem:[%s0 + $0x8] sm:$0xf]
  %v40 = vld [vmem:[%s0 + $0xc] sm:$0xf]
  %v41 = vunpack.c.l.bf16 %v37
  %v42 = vunpack.c.l.bf16 %v38
  %v43 = vunpack.c.l.bf16 %v39
  %v44 = vunpack.c.l.bf16 %v40
  %v45 = vld [vmem:[%s1] sm:$0xff]
  %v46 = vld [vmem:[%s1 + $0x8] sm:$0xf]
  %v47 = vld [vmem:[%s2] sm:$0xff]
  %v48 = vld [vmem:[%s2 + $0x8] sm:$0xf]
  %50 = vset.pattern.permute.xlu0 0
  %51 = vperm.xlu0 %50, %v47
  %v52 = vpop.permute.xlu0 %51
  %55 = vset.pattern.permute.xlu0 0
  %56 = vperm.xlu0 %55, %v48
  %v57 = vpop.permute.xlu0 %56
  %vm59 = vcmask 261120
  %v61 = vsel %vm59, %v45, 0
  %v64 = vsel %vm59, %v46, 0
  %66 = vmatpush.msra.mxu0 0.0
  %67 = vmatpush.msra.mxu0 0.0
  %68 = vmatpush.msra.mxu0 0.0
  %69 = vmatpush.msra.mxu0 0.0
  %70 = vmatpush.msra.mxu0 0.0
  %71 = vmatpush.msra.mxu0 0.0
  %72 = vmatpush.msra.mxu0 0.0
  %73 = vmatpush.msra.mxu0 0.0
  %74 = vmatpush.msra.mxu0 0.0
  %75 = vmatpush.msra.mxu0 0.0
  %76 = vmatpush.msra.mxu0 0.0
  %77 = vmatpush.msra.mxu0 0.0
  %78 = vmatpush.msra.mxu0 %v44
  %79 = vmatpush.msra.mxu0 %v43
  %80 = vmatpush.msra.mxu0 %v42
  %81 = vmatpush.msra.mxu0 %v41
  %82 = vmatmul.f32.gmra.mxu0 %v61
  %v83 = vpop.f32.mrf.mxu0
  %v84 = vadd.f32 %v52, %v83
  %85 = vmatmul.f32.gmra.mxu0 %v64
  %v86 = vpop.f32.mrf.mxu0
  %v87 = vadd.f32 %v57, %v86
  %88 = vdwg.mxu0
  %v89 = vmax.f32 %v84, 0.0
  %v90 = vmax.f32 %v87, 0.0
  %v91 = vld [vmem:[%s3] sm:$0xff]
  %v92 = vld [vmem:[%s3 + $0x8] sm:$0xff]
  %vm93 = vcmask 97280
  %v95 = vsel %vm93, %v91, 0
  %v98 = vsel %vm93, %v92, 0
  %vm100 = vcmask 1043456
  %v102 = vsel %vm100, %v90, 0
  %104 = vmatpush.msra.mxu0 0.0
  %105 = vmatpush.msra.mxu0 0.0
  %106 = vmatpush.msra.mxu0 0.0
  %107 = vmatpush.msra.mxu0 0.0
  %108 = vmatpush.msra.mxu0 0.0
  %109 = vmatpush.msra.mxu0 0.0
  %110 = vmatpush.msra.mxu0 0.0
  %111 = vmatpush.msra.mxu0 0.0
  %112 = vmatpush.msra.mxu0 0.0
  %113 = vmatpush.msra.mxu0 0.0
  %114 = vmatpush.msra.mxu0 0.0
  %115 = vmatpush.msra.mxu0 0.0
  %116 = vmatpush.msra.mxu0 0.0
  %117 = vmatpush.msra.mxu0 0.0
  %118 = vmatpush.msra.mxu0 %v102
  %119 = vmatpush.msra.mxu0 %v89
  %120 = vmatmul.f32.gmra.mxu0 %v95
  %v121 = vpop.f32.mrf.mxu0
  %v122 = vadd.f32 0.0, %v121
  %123 = vmatmul.f32.gmra.mxu0 %v98
  %v124 = vpop.f32.mrf.mxu0
  %v125 = vadd.f32 0.0, %v124
  %126 = vdwg.mxu0
  %v127 = vld [vmem:[%s4] sm:$0xf]
  %129 = vset.pattern.permute.xlu0 0
  %130 = vperm.xlu0 %129, %v127
  %v131 = vpop.permute.xlu0 %130
  %v133 = vadd.f32 %v122, %v131
  %v134 = vmax.f32 %v133, 0.0
  %v135 = vld [vmem:[%s5] sm:$0xf]
  %vm136 = vcmask 31744
  %v138 = vsel %vm136, %v135, 0
  %v141 = vsel %vm100, %v134, 0
  %143 = vmatpush.msra.mxu0 0.0
  %144 = vmatpush.msra.mxu0 0.0
  %145 = vmatpush.msra.mxu0 0.0
  %146 = vmatpush.msra.mxu0 0.0
  %147 = vmatpush.msra.mxu0 0.0
  %148 = vmatpush.msra.mxu0 0.0
  %149 = vmatpush.msra.mxu0 0.0
  %150 = vmatpush.msra.mxu0 0.0
  %151 = vmatpush.msra.mxu0 0.0
  %152 = vmatpush.msra.mxu0 0.0
  %153 = vmatpush.msra.mxu0 0.0
  %154 = vmatpush.msra.mxu0 0.0
  %155 = vmatpush.msra.mxu0 0.0
  %156 = vmatpush.msra.mxu0 0.0
  %157 = vmatpush.msra.mxu0 0.0
  %158 = vmatpush.msra.mxu0 %v141
  %159 = vmatmul.f32.gmra.mxu0 %v138
  %v160 = vpop.f32.mrf.mxu0
  %v161 = vadd.f32 0.0, %v160
  %162 = vdwg.mxu0
  %v165 = vrot.slane %v43, 4
  %v166 = vrot.slane %v44, 4
  %v167 = vsel %vm100, %v165, %v166
  %v170 = vmul.f32 %v41, %v167
  %v171 = vmul.f32 %v42, %v166
  %vm174 = vcmask 1045504
  %v175 = vrot.slane %v170, 2
  %v176 = vrot.slane %v171, 2
  %v177 = vsel %vm174, %v175, %v176
  %vm180 = vcmask 1041408
  %v181 = vsel %vm180, %v176, 0.0
  %v182 = vadd.f32 %v177, %v181
  %v183 = vrot.slane %v182, 4
  %v184 = vadd.f32 %v182, %v183
  %v185 = vrot.slane %v184, 2
  %v186 = vadd.f32 %v184, %v185
  %v187 = vrot.slane %v186, 1
  %v188 = vadd.f32 %v186, %v187
  %v189 = vmul.f32 %v41, %v41
  %v190 = vmul.f32 %v42, %v42
  %v193 = vrot.slane %v189, 2
  %v194 = vrot.slane %v190, 2
  %v195 = vsel %vm174, %v193, %v194
  %v198 = vsel %vm180, %v194, 0.0
  %v199 = vadd.f32 %v195, %v198
  %v200 = vrot.slane %v199, 4
  %v201 = vadd.f32 %v199, %v200
  %v202 = vrot.slane %v201, 2
  %v203 = vadd.f32 %v201, %v202
  %v204 = vrot.slane %v203, 1
  %v205 = vadd.f32 %v203, %v204
  %v206 = vmul.f32 %v43, %v43
  %v207 = vmul.f32 %v44, %v44
  %v210 = vrot.slane %v206, 6
  %v211 = vrot.slane %v207, 6
  %v212 = vsel %vm180, %v210, %v211
  %v215 = vsel %vm180, %v211, 0.0
  %v216 = vadd.f32 %v212, %v215
  %v217 = vrot.slane %v216, 4
  %v218 = vadd.f32 %v216, %v217
  %v219 = vrot.slane %v218, 2
  %v220 = vadd.f32 %v218, %v219
  %v221 = vrot.slane %v220, 1
  %v222 = vadd.f32 %v220, %v221
  %v223 = vmax.f32 %v205, 1e-16
  %v224 = vrsqrt.pop %v223
  %v225 = vmul.f32 %v224, %v223
  %v226 = vmul.f32 %v225, %v224
  %v227 = vmul.f32 0.5, %v226
  %v228 = vsub.f32 1.5, %v227
  %v229 = vmul.f32 %v224, %v228
  %vm230 = vweird.f32 %v223
  %vm231 = vweird.f32 %v224
  %vm232 = vmor %vm230, %vm231
  %v233 = vsel %vm232, %v224, %v229
  %v234 = vmax.f32 %v222, 1e-16
  %v235 = vrsqrt.pop %v234
  %v236 = vmul.f32 %v235, %v234
  %v237 = vmul.f32 %v236, %v235
  %v238 = vmul.f32 0.5, %v237
  %v239 = vsub.f32 1.5, %v238
  %v240 = vmul.f32 %v235, %v239
  %vm241 = vweird.f32 %v234
  %vm242 = vweird.f32 %v235
  %vm243 = vmor %vm241, %vm242
  %v244 = vsel %vm243, %v235, %v240
  %v245 = vmul.f32 %v233, %v244
  %v246 = vmul.f32 %v188, %v245
  %v247 = vmul.f32 %v246, 10.0
  %v248 = vadd.f32 %v125, %v161
  %v249 = vld [vmem:[%s6] sm:$0xf]
  %251 = vset.pattern.permute.xlu0 0
  %252 = vperm.xlu0 %251, %v249
  %v253 = vpop.permute.xlu0 %252
  %v255 = vmul.f32 %v253, %v247
  %v256 = vadd.f32 %v248, %v255
  %v257 = vld [vmem:[%s7] sm:$0xf]
  %259 = vset.pattern.permute.xlu0 0
  %260 = vperm.xlu0 %259, %v257
  %v261 = vpop.permute.xlu0 %260
  %v263 = vadd.f32 %v256, %v261
  %v264 = vmax.f32 %v263, 0.0
  %v265 = vld [vmem:[%s8] sm:$0x1]
  %v266 = vld [vmem:[#allocation2] sm:$0x1]
  %268 = vset.pattern.permute.xlu0 0
  %269 = vperm.xlu0 %268, %v266
  %v270 = vpop.permute.xlu0 %269
  %v272 = vperm.slane %v270, 0
  %v274 = vsel %vm136, %v265, 0
  %v277 = vsel %vm100, %v264, 0
  %279 = vmatpush.msra.mxu0 0.0
  %280 = vmatpush.msra.mxu0 0.0
  %281 = vmatpush.msra.mxu0 0.0
  %282 = vmatpush.msra.mxu0 0.0
  %283 = vmatpush.msra.mxu0 0.0
  %284 = vmatpush.msra.mxu0 0.0
  %285 = vmatpush.msra.mxu0 0.0
  %286 = vmatpush.msra.mxu0 0.0
  %287 = vmatpush.msra.mxu0 0.0
  %288 = vmatpush.msra.mxu0 0.0
  %289 = vmatpush.msra.mxu0 0.0
  %290 = vmatpush.msra.mxu0 0.0
  %291 = vmatpush.msra.mxu0 0.0
  %292 = vmatpush.msra.mxu0 0.0
  %293 = vmatpush.msra.mxu0 0.0
  %294 = vmatpush.msra.mxu0 %v277
  %295 = vmatmul.f32.gmra.mxu0 %v274
  %v296 = vpop.f32.mrf.mxu0
  %v297 = vadd.f32 %v272, %v296
  %298 = vdwg.mxu0
  %299 = vst [vmem:[%s10] sm:$0x1] %v297
  // Predicated region
  $region42: #{net_forward.1} parent=0 // pred_check
    _
  $region43: #{net_forward.1} parent=0 // pred_check_branch
    %301 = sbr.rel (0) target = $region45
  $region44: #{net_forward.1} parent=0 // pred_region
    _
  $region45: #{net_forward.1} parent=0 // pred_fallthru
    _
  // Predicated region
  $region46: #{net_forward.1} parent=0 // pred_check
    _
  $region47: #{net_forward.1} parent=0 // pred_check_branch
    %303 = sbr.rel (0) target = $region49
  $region48: #{net_forward.1} parent=0 // pred_region
    _
  $region49: #{net_forward.1} parent=0 // pred_fallthru
    _

</llo_original>
